<compile_context>
chip_gen: v7x
topology: tpu7x:2x2x1
jax: 0.10.0
libtpu: 0.0.40
codegen_flags: <defaults>
</compile_context>

<pallas_src>
import jax
import jax.numpy as jnp
from jax.experimental import pallas as pl
from jax.experimental.pallas import tpu as pltpu

HIDDEN = 16
IN_DIM = 1
OUT_DIM = 2
MAX_BLOCK_ROWS = 4096       # packed rows per grid step


def _pick_group_size():
    """Batch elements packed per vreg row: 16 (256 lanes) on 256-wide-MXU chips
    (v6e / v7x), 8 (128 lanes) on v5e and older / unknown backends."""
    try:
        kind = jax.devices()[0].device_kind.lower()
    except Exception:
        return 8
    for old in ("v2", "v3", "v4", "v5"):
        if old in kind:
            return 8
    return 16


G = _pick_group_size()
LANES = G * HIDDEN          # 128 or 256 — lane-dense hidden width
OUT_LANES = G * OUT_DIM     # 16 or 32  — packed output width


def _mlp_kernel(x_ref, w1_ref, b1_ref, w2_ref, b2_ref, w3_ref, b3_ref,
                w4_ref, b4_ref, o_ref):
    # Layer 1: (TN, G) @ (G, LANES) — tiny contraction, kept f32 so the scalar
    # input enters the network at full precision.
    h = jnp.sin(
        jnp.dot(x_ref[...], w1_ref[...], preferred_element_type=jnp.float32)
        + b1_ref[...])
    # Hidden / output layers: bf16 MXU operands, f32 accumulate.
    # TODO(synk): if the VALU becomes the binding slot after the bf16 change,
    # a bounded-range sin polynomial is the next lever.
    h = jnp.sin(
        jnp.dot(h.astype(jnp.bfloat16), w2_ref[...],
                preferred_element_type=jnp.float32) + b2_ref[...])
    h = jnp.sin(
        jnp.dot(h.astype(jnp.bfloat16), w3_ref[...],
                preferred_element_type=jnp.float32) + b3_ref[...])
    o_ref[...] = (
        jnp.dot(h.astype(jnp.bfloat16), w4_ref[...],
                preferred_element_type=jnp.float32) + b4_ref[...])


def pack_params(params):
    """Pack weights once (outside the jitted forward) into block-diagonal form.
    Hidden/output weights are stored as bf16 (MXU-native); layer-1 weight and
    all biases stay f32."""
    (w1, b1), (w2, b2), (w3, b3), (w4, b4) = params
    eye = jnp.eye(G, dtype=jnp.float32)
    w1s = jnp.kron(eye, w1.astype(jnp.float32))                        # (G, LANES) f32
    w2b = jnp.kron(eye, w2.astype(jnp.float32)).astype(jnp.bfloat16)   # (LANES, LANES)
    w3b = jnp.kron(eye, w3.astype(jnp.float32)).astype(jnp.bfloat16)   # (LANES, LANES)
    w4b = jnp.kron(eye, w4.astype(jnp.float32)).astype(jnp.bfloat16)   # (LANES, OUT_LANES)
    b1t = jnp.tile(b1.astype(jnp.float32), G)[None, :]                 # (1, LANES)
    b2t = jnp.tile(b2.astype(jnp.float32), G)[None, :]                 # (1, LANES)
    b3t = jnp.tile(b3.astype(jnp.float32), G)[None, :]                 # (1, LANES)
    b4t = jnp.tile(b4.astype(jnp.float32), G)[None, :]                 # (1, OUT_LANES)
    return (w1s, b1t, w2b, b2t, w3b, b3t, w4b, b4t)


@jax.jit
def net_forward(x, packed):
    """x: (N, 1) float32 -> (N, 2) float32, matching the PyTorch Net."""
    w1s, b1t, w2b, b2t, w3b, b3t, w4b, b4t = packed

    n = x.shape[0]
    rows = -(-n // G)                                     # packed rows needed
    # Block size: big enough to amortize per-step overhead, but split so that
    # larger batches always give >= 2 grid steps (v7x megacore sharding).
    half_rows = -(-rows // 2)
    block_rows = min(MAX_BLOCK_ROWS, max(8, ((half_rows + 7) // 8) * 8))
    rows_pad = ((rows + block_rows - 1) // block_rows) * block_rows
    n_pad = rows_pad * G

    # Narrow packing of x: (N, 1) -> (rows_pad, G); ~4 B/element of HBM I/O.
    x_flat = x.reshape(-1).astype(jnp.float32)
    x_packed = jnp.pad(x_flat, (0, n_pad - n)).reshape(rows_pad, G)

    grid = (rows_pad // block_rows,)

    out = pl.pallas_call(
        _mlp_kernel,
        out_shape=jax.ShapeDtypeStruct((rows_pad, OUT_LANES), jnp.float32),
        grid=grid,
        in_specs=[
            pl.BlockSpec((block_rows, G), lambda i: (i, 0)),       # x (tiled)
            pl.BlockSpec((G, LANES), lambda i: (0, 0)),            # w1 (resident)
            pl.BlockSpec((1, LANES), lambda i: (0, 0)),            # b1
            pl.BlockSpec((LANES, LANES), lambda i: (0, 0)),        # w2
            pl.BlockSpec((1, LANES), lambda i: (0, 0)),            # b2
            pl.BlockSpec((LANES, LANES), lambda i: (0, 0)),        # w3
            pl.BlockSpec((1, LANES), lambda i: (0, 0)),            # b3
            pl.BlockSpec((LANES, OUT_LANES), lambda i: (0, 0)),    # w4
            pl.BlockSpec((1, OUT_LANES), lambda i: (0, 0)),        # b4
        ],
        out_specs=pl.BlockSpec((block_rows, OUT_LANES), lambda i: (i, 0)),
        compiler_params=pltpu.CompilerParams(
            dimension_semantics=("parallel",)),                    # v7x megacore
    )(x_packed, w1s, b1t, w2b, b2t, w3b, b3t, w4b, b4t)

    # Unpack: (rows_pad, G*2) -> (n_pad, 2) -> (N, 2)
    return out.reshape(n_pad, OUT_DIM)[:n]


def init_params(key, hidden_size=HIDDEN):
    """Deterministic init mimicking PyTorch nn.Linear default
    (U[-1/sqrt(fan_in), 1/sqrt(fan_in)]). Weights stored as
    (in_features, out_features) so the forward computes x @ W + b."""
    dims = [(IN_DIM, hidden_size), (hidden_size, hidden_size),
            (hidden_size, hidden_size), (hidden_size, OUT_DIM)]
    params = []
    for (fan_in, fan_out) in dims:
        key, kw, kb = jax.random.split(key, 3)
        bound = 1.0 / (fan_in ** 0.5)
        w = jax.random.uniform(kw, (fan_in, fan_out), jnp.float32, -bound, bound)
        b = jax.random.uniform(kb, (fan_out,), jnp.float32, -bound, bound)
        params.append((w, b))
    return params


def _reference_forward(x, params):
    h = x.astype(jnp.float32)
    for i, (w, b) in enumerate(params):
        h = h @ w + b
        if i < len(params) - 1:
            h = jnp.sin(h)
    return h


if __name__ == "__main__":
    key = jax.random.PRNGKey(0)
    key_p, key_x = jax.random.split(key)
    params = init_params(key_p)
    packed = pack_params(params)   # one-time packing, hoisted out of forward

    # Cover: tiny batch, batch not a multiple of G (padding path), and a batch
    # large enough for a multi-step grid (both TensorCores on v7x).
    for n in (8, 37, 1000):
        key_x, sub = jax.random.split(key_x)
        x = jax.random.uniform(sub, (n, 1), jnp.float32, -1.0, 1.0)
        y = jax.block_until_ready(net_forward(x, packed))
        y_ref = _reference_forward(x, params)
        assert y.shape == (n, OUT_DIM), y.shape
        err = float(jnp.max(jnp.abs(y - y_ref)))
        # bf16 MXU operands on the hidden layers -> loosened tolerance vs the
        # strict-f32 reference (review-sanctioned trade).
        assert err < 5e-2, err

    print("KERNEL_OK")
</pallas_src>

<mosaic_0001>
module attributes {stable_mosaic.version = 11 : i64} {
  func.func @_mlp_kernel(%arg0: i32, %arg1: memref<8x16xf32, #tpu.memory_space<vmem>>, %arg2: memref<16x256xf32, #tpu.memory_space<vmem>>, %arg3: memref<1x256xf32, #tpu.memory_space<vmem>>, %arg4: memref<256x256xbf16, #tpu.memory_space<vmem>>, %arg5: memref<1x256xf32, #tpu.memory_space<vmem>>, %arg6: memref<256x256xbf16, #tpu.memory_space<vmem>>, %arg7: memref<1x256xf32, #tpu.memory_space<vmem>>, %arg8: memref<256x32xbf16, #tpu.memory_space<vmem>>, %arg9: memref<1x32xf32, #tpu.memory_space<vmem>>, %arg10: memref<8x32xf32, #tpu.memory_space<vmem>>) attributes {dimension_semantics = [#tpu.dimension_semantics<parallel>], iteration_bounds = array<i64: 1>, scalar_prefetch = 0 : i64, scratch_operands = 0 : i64, tpu.core_type = #tpu.core_type<tc>, window_params = [{transform_indices = @transform_0, window_bounds = array<i64: 8, 16>}, {pipeline_mode = #tpu.pipeline_mode<synchronous>, transform_indices = @transform_1, window_bounds = array<i64: 16, 256>}, {pipeline_mode = #tpu.pipeline_mode<synchronous>, transform_indices = @transform_2, window_bounds = array<i64: 1, 256>}, {pipeline_mode = #tpu.pipeline_mode<synchronous>, transform_indices = @transform_3, window_bounds = array<i64: 256, 256>}, {pipeline_mode = #tpu.pipeline_mode<synchronous>, transform_indices = @transform_4, window_bounds = array<i64: 1, 256>}, {pipeline_mode = #tpu.pipeline_mode<synchronous>, transform_indices = @transform_5, window_bounds = array<i64: 256, 256>}, {pipeline_mode = #tpu.pipeline_mode<synchronous>, transform_indices = @transform_6, window_bounds = array<i64: 1, 256>}, {pipeline_mode = #tpu.pipeline_mode<synchronous>, transform_indices = @transform_7, window_bounds = array<i64: 256, 32>}, {pipeline_mode = #tpu.pipeline_mode<synchronous>, transform_indices = @transform_8, window_bounds = array<i64: 1, 32>}, {transform_indices = @transform_9, window_bounds = array<i64: 8, 32>}]} {
    %c0 = arith.constant 0 : index
    %c0_0 = arith.constant 0 : index
    %0 = vector.load %arg1[%c0, %c0_0] : memref<8x16xf32, #tpu.memory_space<vmem>>, vector<8x16xf32>
    %c0_1 = arith.constant 0 : index
    %c0_2 = arith.constant 0 : index
    %1 = vector.load %arg2[%c0_1, %c0_2] : memref<16x256xf32, #tpu.memory_space<vmem>>, vector<16x256xf32>
    %cst = arith.constant dense<0.000000e+00> : vector<8x256xf32>
    %2 = tpu.matmul %0, %1, %cst {dimension_numbers = #tpu.dot_dimension_numbers<[1], [0], [0], [1], [0, 0, 1, 1], [], []>} : vector<8x16xf32>, vector<16x256xf32>, vector<8x256xf32> -> vector<8x256xf32>
    %c0_3 = arith.constant 0 : index
    %c0_4 = arith.constant 0 : index
    %3 = vector.load %arg3[%c0_3, %c0_4] : memref<1x256xf32, #tpu.memory_space<vmem>>, vector<1x256xf32>
    %4 = vector.broadcast %3 : vector<1x256xf32> to vector<8x256xf32>
    %5 = arith.addf %2, %4 : vector<8x256xf32>
    %6 = math.sin %5 : vector<8x256xf32>
    %7 = arith.truncf %6 : vector<8x256xf32> to vector<8x256xbf16>
    %c0_5 = arith.constant 0 : index
    %c0_6 = arith.constant 0 : index
    %8 = vector.load %arg4[%c0_5, %c0_6] : memref<256x256xbf16, #tpu.memory_space<vmem>>, vector<256x256xbf16>
    %cst_7 = arith.constant dense<0.000000e+00> : vector<8x256xf32>
    %9 = tpu.matmul %7, %8, %cst_7 {dimension_numbers = #tpu.dot_dimension_numbers<[1], [0], [0], [1], [0, 0, 1, 1], [], []>} : vector<8x256xbf16>, vector<256x256xbf16>, vector<8x256xf32> -> vector<8x256xf32>
    %c0_8 = arith.constant 0 : index
    %c0_9 = arith.constant 0 : index
    %10 = vector.load %arg5[%c0_8, %c0_9] : memref<1x256xf32, #tpu.memory_space<vmem>>, vector<1x256xf32>
    %11 = vector.broadcast %10 : vector<1x256xf32> to vector<8x256xf32>
    %12 = arith.addf %9, %11 : vector<8x256xf32>
    %13 = math.sin %12 : vector<8x256xf32>
    %14 = arith.truncf %13 : vector<8x256xf32> to vector<8x256xbf16>
    %c0_10 = arith.constant 0 : index
    %c0_11 = arith.constant 0 : index
    %15 = vector.load %arg6[%c0_10, %c0_11] : memref<256x256xbf16, #tpu.memory_space<vmem>>, vector<256x256xbf16>
    %cst_12 = arith.constant dense<0.000000e+00> : vector<8x256xf32>
    %16 = tpu.matmul %14, %15, %cst_12 {dimension_numbers = #tpu.dot_dimension_numbers<[1], [0], [0], [1], [0, 0, 1, 1], [], []>} : vector<8x256xbf16>, vector<256x256xbf16>, vector<8x256xf32> -> vector<8x256xf32>
    %c0_13 = arith.constant 0 : index
    %c0_14 = arith.constant 0 : index
    %17 = vector.load %arg7[%c0_13, %c0_14] : memref<1x256xf32, #tpu.memory_space<vmem>>, vector<1x256xf32>
    %18 = vector.broadcast %17 : vector<1x256xf32> to vector<8x256xf32>
    %19 = arith.addf %16, %18 : vector<8x256xf32>
    %20 = math.sin %19 : vector<8x256xf32>
    %21 = arith.truncf %20 : vector<8x256xf32> to vector<8x256xbf16>
    %c0_15 = arith.constant 0 : index
    %c0_16 = arith.constant 0 : index
    %22 = vector.load %arg8[%c0_15, %c0_16] : memref<256x32xbf16, #tpu.memory_space<vmem>>, vector<256x32xbf16>
    %cst_17 = arith.constant dense<0.000000e+00> : vector<8x32xf32>
    %23 = tpu.matmul %21, %22, %cst_17 {dimension_numbers = #tpu.dot_dimension_numbers<[1], [0], [0], [1], [0, 0, 1, 1], [], []>} : vector<8x256xbf16>, vector<256x32xbf16>, vector<8x32xf32> -> vector<8x32xf32>
    %c0_18 = arith.constant 0 : index
    %c0_19 = arith.constant 0 : index
    %24 = vector.load %arg9[%c0_18, %c0_19] : memref<1x32xf32, #tpu.memory_space<vmem>>, vector<1x32xf32>
    %25 = vector.broadcast %24 : vector<1x32xf32> to vector<8x32xf32>
    %26 = arith.addf %23, %25 : vector<8x32xf32>
    %c0_20 = arith.constant 0 : index
    %c0_21 = arith.constant 0 : index
    %27 = vector.load %arg10[%c0_20, %c0_21] : memref<8x32xf32, #tpu.memory_space<vmem>>, vector<8x32xf32>
    tpu.vector_store %arg10[%c0_20, %c0_21], %26 {strides = array<i32>} : memref<8x32xf32, #tpu.memory_space<vmem>>, vector<8x32xf32>,
    return
  }
  func.func @transform_0(%arg0: i32) -> (i32, i32) {
    %c0_i32 = arith.constant 0 : i32
    %c0_i32_0 = arith.constant 0 : i32
    return %arg0, %c0_i32 : i32, i32
  }
  func.func @transform_1(%arg0: i32) -> (i32, i32) {
    %c0_i32 = arith.constant 0 : i32
    %c0_i32_0 = arith.constant 0 : i32
    %c0_i32_1 = arith.constant 0 : i32
    return %c0_i32, %c0_i32_0 : i32, i32
  }
  func.func @transform_2(%arg0: i32) -> (i32, i32) {
    %c0_i32 = arith.constant 0 : i32
    %c0_i32_0 = arith.constant 0 : i32
    %c0_i32_1 = arith.constant 0 : i32
    return %c0_i32, %c0_i32_0 : i32, i32
  }
  func.func @transform_3(%arg0: i32) -> (i32, i32) {
    %c0_i32 = arith.constant 0 : i32
    %c0_i32_0 = arith.constant 0 : i32
    %c0_i32_1 = arith.constant 0 : i32
    return %c0_i32, %c0_i32_0 : i32, i32
  }
  func.func @transform_4(%arg0: i32) -> (i32, i32) {
    %c0_i32 = arith.constant 0 : i32
    %c0_i32_0 = arith.constant 0 : i32
    %c0_i32_1 = arith.constant 0 : i32
    return %c0_i32, %c0_i32_0 : i32, i32
  }
  func.func @transform_5(%arg0: i32) -> (i32, i32) {
    %c0_i32 = arith.constant 0 : i32
    %c0_i32_0 = arith.constant 0 : i32
    %c0_i32_1 = arith.constant 0 : i32
    return %c0_i32, %c0_i32_0 : i32, i32
  }
  func.func @transform_6(%arg0: i32) -> (i32, i32) {
    %c0_i32 = arith.constant 0 : i32
    %c0_i32_0 = arith.constant 0 : i32
    %c0_i32_1 = arith.constant 0 : i32
    return %c0_i32, %c0_i32_0 : i32, i32
  }
  func.func @transform_7(%arg0: i32) -> (i32, i32) {
    %c0_i32 = arith.constant 0 : i32
    %c0_i32_0 = arith.constant 0 : i32
    %c0_i32_1 = arith.constant 0 : i32
    return %c0_i32, %c0_i32_0 : i32, i32
  }
  func.func @transform_8(%arg0: i32) -> (i32, i32) {
    %c0_i32 = arith.constant 0 : i32
    %c0_i32_0 = arith.constant 0 : i32
    %c0_i32_1 = arith.constant 0 : i32
    return %c0_i32, %c0_i32_0 : i32, i32
  }
  func.func @transform_9(%arg0: i32) -> (i32, i32) {
    %c0_i32 = arith.constant 0 : i32
    %c0_i32_0 = arith.constant 0 : i32
    return %arg0, %c0_i32 : i32, i32
  }
}

</mosaic_0001>

<llo_original>
// kernel: net_forward.1
$region0: #{net_forward.1}
  #allocation0 [shape = 'u32[]', space=smem, size = 0x4, offset = 0x4, fixed_abs, tag = 'smem constant byte address 0x4 - core index']
  #allocation1 [shape = 'u32[144,128]{1,0:T(1,128)}', space=vmem, size = 0x12000, scoped, tag = 'internal scratch']
  %s0 = inlined_call_operand.vmem [shape: f32[8,16], index: 0, kind: input, shape index: {}]
  %s1 = inlined_call_operand.vmem [shape: f32[16,256], index: 1, kind: input, shape index: {}]
  %s2 = inlined_call_operand.vmem [shape: f32[1,256], index: 2, kind: input, shape index: {}]
  %s3 = inlined_call_operand.hbm [shape: bf16[256,256], index: 3, kind: input, shape index: {}]
  %s4 = inlined_call_operand.vmem [shape: f32[1,256], index: 4, kind: input, shape index: {}]
  %s5 = inlined_call_operand.hbm [shape: bf16[256,256], index: 5, kind: input, shape index: {}]
  %s6 = inlined_call_operand.vmem [shape: f32[1,256], index: 6, kind: input, shape index: {}]
  %s7 = inlined_call_operand.vmem [shape: bf16[256,32], index: 7, kind: input, shape index: {}]
  %s8 = inlined_call_operand.vmem [shape: f32[1,32], index: 8, kind: input, shape index: {}]
  %s9 = inlined_call_operand.vmem [shape: f32[8,32], index: 9, kind: output, shape index: {}]
  %s10 = sld [smem:[#allocation0]]
  $region54: #{net_forward.1} parent=0
    _
  %s12 = ssub.s32 1, %s10
  %s13 = scalar_select 0, %s12, %s10
  $region1: #{net_forward.1} parent=0
    #allocation2 [shape = 'u8[131072]{0}', space=vmem, size = 0x20000, scoped, tag = 'input window, operand 3, single buffered']
    #allocation3 [shape = 's32[1]{0}', space=sflag, size = 0x4, scoped, tag = 'scoped memory for net_forward.1']
    #allocation4 [shape = 'u8[131072]{0}', space=vmem, size = 0x20000, scoped, tag = 'input window, operand 5, single buffered']
    #allocation5 [shape = 's32[1]{0}', space=sflag, size = 0x4, scoped, tag = 'scoped memory for net_forward.1']
    %14 = vsyncpa [#allocation3], 0
    %15 = vsyncpa [#allocation5], 0
    // Predicated region
    $region2: #{net_forward.1} parent=1 // pred_check
      _
    $region3: #{net_forward.1} parent=1 // pred_check_branch
      %17 = sbr.rel (0) target = $region5
    $region4: #{net_forward.1} parent=1 // pred_region
      _
    $region5: #{net_forward.1} parent=1 // pred_fallthru
      _
    // Predicated region
    $region6: #{net_forward.1} parent=1 // pred_check
      _
    $region7: #{net_forward.1} parent=1 // pred_check_branch
      %19 = sbr.rel (0) target = $region9
    $region8: #{net_forward.1} parent=1 // pred_region
      _
    $region9: #{net_forward.1} parent=1 // pred_fallthru
      _
    // Predicated region
    $region10: #{net_forward.1} parent=1 // pred_check
      _
    $region11: #{net_forward.1} parent=1 // pred_check_branch
      %21 = sbr.rel (0) target = $region13
    $region12: #{net_forward.1} parent=1 // pred_region
      _
    $region13: #{net_forward.1} parent=1 // pred_fallthru
      _
    // Predicated region
    $region14: #{net_forward.1} parent=1 // pred_check
      _
    $region15: #{net_forward.1} parent=1 // pred_check_branch
      %23 = sbr.rel (0) target = $region17
    $region16: #{net_forward.1} parent=1 // pred_region
      %s25 = ssub.s32 4096, 4096
      %26 = vsyncadd [#allocation3], %s25
      %s27 = sshll.u32 [#allocation2], 4
      %s28 = int_to_ptr.vmem [resolvable:$true] %s27
      %33 = dma.hbm_to_vmem [thread:$0]  %s3, 4096, %s28, [#allocation3], 128, 128, 8
    $region17: #{net_forward.1} parent=1 // pred_fallthru
      _
    // Predicated region
    $region18: #{net_forward.1} parent=1 // pred_check
      _
    $region19: #{net_forward.1} parent=1 // pred_check_branch
      %35 = sbr.rel (0) target = $region21
    $region20: #{net_forward.1} parent=1 // pred_region
      _
    $region21: #{net_forward.1} parent=1 // pred_fallthru
      _
    // Predicated region
    $region22: #{net_forward.1} parent=1 // pred_check
      _
    $region23: #{net_forward.1} parent=1 // pred_check_branch
      %37 = sbr.rel (0) target = $region25
    $region24: #{net_forward.1} parent=1 // pred_region
      %s39 = ssub.s32 4096, 4096
      %40 = vsyncadd [#allocation5], %s39
      %s41 = sshll.u32 [#allocation4], 4
      %s42 = int_to_ptr.vmem [resolvable:$true] %s41
      %47 = dma.hbm_to_vmem [thread:$0]  %s5, 4096, %s42, [#allocation5], 128, 128, 8
    $region25: #{net_forward.1} parent=1 // pred_fallthru
      _
    // Predicated region
    $region26: #{net_forward.1} parent=1 // pred_check
      _
    $region27: #{net_forward.1} parent=1 // pred_check_branch
      %49 = sbr.rel (0) target = $region29
    $region28: #{net_forward.1} parent=1 // pred_region
      _
    $region29: #{net_forward.1} parent=1 // pred_fallthru
      _
    // Predicated region
    $region30: #{net_forward.1} parent=1 // pred_check
      _
    $region31: #{net_forward.1} parent=1 // pred_check_branch
      %51 = sbr.rel (0) target = $region33
    $region32: #{net_forward.1} parent=1 // pred_region
      _
    $region33: #{net_forward.1} parent=1 // pred_fallthru
      _
    // Predicated region
    $region34: #{net_forward.1} parent=1 // pred_check
      _
    $region35: #{net_forward.1} parent=1 // pred_check_branch
      %53 = sbr.rel (0) target = $region37
    $region36: #{net_forward.1} parent=1 // pred_region
      _
    $region37: #{net_forward.1} parent=1 // pred_fallthru
      _
    // Predicated region
    $region38: #{net_forward.1} parent=1 // pred_check
      _
    $region39: #{net_forward.1} parent=1 // pred_check_branch
      %55 = sbr.rel (0) target = $region41
    $region40: #{net_forward.1} parent=1 // pred_region
      %56 = dma.done [#allocation3], 4096
    $region41: #{net_forward.1} parent=1 // pred_fallthru
      _
    // Predicated region
    $region42: #{net_forward.1} parent=1 // pred_check
      _
    $region43: #{net_forward.1} parent=1 // pred_check_branch
      %58 = sbr.rel (0) target = $region45
    $region44: #{net_forward.1} parent=1 // pred_region
      %59 = dma.done [#allocation5], 4096
    $region45: #{net_forward.1} parent=1 // pred_fallthru
      _
    %v61 = vld [vmem:[%s0] sm:$0xff]
    %v62 = vld [vmem:[%s1] sm:$0xff]
    %v63 = vld [vmem:[%s1 + $0x8] sm:$0xff]
    %v64 = vld [vmem:[%s1 + $0x10] sm:$0xff]
    %v65 = vld [vmem:[%s1 + $0x18] sm:$0xff]
    %v66 = vld [vmem:[%s2] sm:$0x3]
    %v68 = vlaneseq
    %v69 = vshrl.u32 %v68, 7
    %v70 = vsub.s32 0, %v69
    %v71 = vrot.slane %v66, %v70
    %v72 = vlaneseq
    %v73 = vshrl.u32 %v72, 7
    %v74 = vsub.s32 1, %v73
    %v75 = vrot.slane %v66, %v74
    %vm78 = vcmask 130048
    %v80 = vsel %vm78, %v61, 0
    %82 = vmatprep.subr.mxu0 %v63
    %83 = vmatpush1.msra.mxu0 %v62
    %84 = vmatprep.subr.mxu0 %v65
    %85 = vmatpush1.msra.mxu0 %v64
    %86 = vmatprep.subr.mxu0 0.0
    %87 = vmatpush1.msra.mxu0 0.0
    %88 = vmatprep.subr.mxu0 0.0
    %89 = vmatpush1.msra.mxu0 0.0
    %90 = vmatprep.subr.mxu0 0.0
    %91 = vmatpush1.msra.mxu0 0.0
    %92 = vmatprep.subr.mxu0 0.0
    %93 = vmatpush1.msra.mxu0 0.0
    %94 = vmatprep.subr.mxu0 0.0
    %95 = vmatpush1.msra.mxu0 0.0
    %96 = vmatprep.subr.mxu0 0.0
    %97 = vmatpush1.msra.mxu0 0.0
    %98 = vmatprep.subr.mxu0 0.0
    %99 = vmatpush1.msra.mxu0 0.0
    %100 = vmatprep.subr.mxu0 0.0
    %101 = vmatpush1.msra.mxu0 0.0
    %102 = vmatprep.subr.mxu0 0.0
    %103 = vmatpush1.msra.mxu0 0.0
    %104 = vmatprep.subr.mxu0 0.0
    %105 = vmatpush1.msra.mxu0 0.0
    %106 = vmatprep.subr.mxu0 0.0
    %107 = vmatpush1.msra.mxu0 0.0
    %108 = vmatprep.subr.mxu0 0.0
    %109 = vmatpush1.msra.mxu0 0.0
    %110 = vmatprep.subr.mxu0 0.0
    %111 = vmatpush1.msra.mxu0 0.0
    %112 = vmatprep.subr.mxu0 0.0
    %113 = vmatpush1.msra.mxu0 0.0
    %114 = vmatprep.subr.mxu0 0.0
    %115 = vmatpush1.msra.mxu0 0.0
    %116 = vmatprep.subr.mxu0 0.0
    %117 = vmatpush1.msra.mxu0 0.0
    %118 = vmatprep.subr.mxu0 0.0
    %119 = vmatpush1.msra.mxu0 0.0
    %120 = vmatprep.subr.mxu0 0.0
    %121 = vmatpush1.msra.mxu0 0.0
    %122 = vmatprep.subr.mxu0 0.0
    %123 = vmatpush1.msra.mxu0 0.0
    %124 = vmatprep.subr.mxu0 0.0
    %125 = vmatpush1.msra.mxu0 0.0
    %126 = vmatprep.subr.mxu0 0.0
    %127 = vmatpush1.msra.mxu0 0.0
    %128 = vmatprep.subr.mxu0 0.0
    %129 = vmatpush1.msra.mxu0 0.0
    %130 = vmatprep.subr.mxu0 0.0
    %131 = vmatpush1.msra.mxu0 0.0
    %132 = vmatprep.subr.mxu0 0.0
    %133 = vmatpush1.msra.mxu0 0.0
    %134 = vmatprep.subr.mxu0 0.0
    %135 = vmatpush1.msra.mxu0 0.0
    %136 = vmatprep.subr.mxu0 0.0
    %137 = vmatpush1.msra.mxu0 0.0
    %138 = vmatprep.subr.mxu0 0.0
    %139 = vmatpush1.msra.mxu0 0.0
    %140 = vmatprep.subr.mxu0 0.0
    %141 = vmatpush1.msra.mxu0 0.0
    %142 = vmatprep.subr.mxu0 0.0
    %143 = vmatpush1.msra.mxu0 0.0
    %144 = vmatprep.subr.mxu0 0.0
    %145 = vmatpush1.msra.mxu0 0.0
    %146 = vmatprep.mubr.f32.mxu0 0.0
    %147 = vmatmul.mubr.f32.gmra.mrb[0].mxu0 %v80
    %v148 = vpop.f32.mrb[0].mxu0
    %v149 = vadd.f32 %v71, %v148
    %v150 = vpop.f32.mrb[0].mxu0
    %v151 = vadd.f32 %v75, %v150
    %152 = vdwg.mxu0
    %v153 = vand.u32 2147483647, %v149
    %vm154 = vcmp.le.f32.partialorder %v153, 0.7853982
    %vm155 = vcmp.lt.s32.totalorder %v149, 0
    %v156 = vand.u32 %v149, 2139095040
    %v157 = vshrl.u32 %v156, 23
    %v158 = vsub.s32 %v157, 127
    %v159 = vand.u32 2147483647, %v149
    %v160 = vand.u32 %v159, 8388607
    %v161 = vor.u32 %v160, 8388608
    %v162 = vsub.s32 0, %v161
    %v163 = vadd.s32 %v158, 1
    %vm164 = vcmp.gt.s32.totalorder %v163, 0
    %v165 = vsel %vm164, %v163, 0
    %v166 = vshrl.u32 %v165, 5
    %v167 = vand.u32 %v165, 31
    %v168 = vsub.s32 32, %v167
    %v169 = vshrl.u32 683565275, %v168
    %v170 = vshll.u32 683565275, %v167
    %v171 = vshrl.u32 2475754826, %v168
    %v172 = vor.u32 %v170, %v171
    %v173 = vshll.u32 2475754826, %v167
    %v174 = vshrl.u32 2131351028, %v168
    %v175 = vor.u32 %v173, %v174
    %v176 = vshll.u32 2131351028, %v167
    %v177 = vshrl.u32 2102212464, %v168
    %v178 = vor.u32 %v176, %v177
    %v179 = vshll.u32 2102212464, %v167
    %v180 = vshrl.u32 920167782, %v168
    %v181 = vor.u32 %v179, %v180
    %v182 = vshll.u32 920167782, %v167
    %v183 = vshrl.u32 1326507024, %v168
    %v184 = vor.u32 %v182, %v183
    %vm185 = vcmp.lt.s32.totalorder %v166, 1
    %vm186 = vcmp.lt.s32.totalorder %v166, 2
    %vm187 = vcmp.lt.s32.totalorder %v166, 3
    %vm188 = vcmp.lt.s32.totalorder %v166, 4
    %v189 = vsel %vm185, %v169, %v172
    %v190 = vsel %vm188, %v178, 2102212464
    %v191 = vsel %vm187, %v175, %v190
    %v192 = vsel %vm186, %v189, %v191
    %v193 = vsel %vm185, %v172, %v175
    %v194 = vsel %vm188, %v181, 920167782
    %v195 = vsel %vm187, %v178, %v194
    %v196 = vsel %vm186, %v193, %v195
    %v197 = vsel %vm185, %v175, %v178
    %v198 = vsel %vm188, %v184, 1326507024
    %v199 = vsel %vm187, %v181, %v198
    %v200 = vsel %vm186, %v197, %v199
    %v201 = vshll.u32 %v161, 8
    %v202 = vmul.u32.u64.compose %v201, %v200
    %v203 = vextract.low.u32 %v202
    %v204 = vextract.high.u32 %v202
    %v205 = vmul.u32.u64.compose %v201, %v196
    %v206 = vextract.low.u32 %v205
    %v207 = vextract.high.u32 %v205
    %v208 = vmul.u32 %v201, %v192
    %v209 = vadd.s32 %v204, %v206
    %vm210 = vc.u32 %v204, %v206
    %v211 = vadd.s32 %v207, 1
    %v212 = vsel %vm210, %v211, %v207
    %v213 = vadd.s32 %v208, %v212
    %v214 = vadd.s32 %v213, 536870912
    %v215 = vshrl.u32 %v214, 30
    %v216 = vshll.u32 %v215, 30
    %v217 = vsub.s32 %v213, %v216
    %vm218 = vcmp.lt.s32.totalorder %v217, 0
    %v219 = vsub.s32 0, %v217
    %v220 = vsel %vm218, %v219, %v217
    %v221 = vclz %v220
    %v222 = vsub.s32 %v221, 2
    %vm223 = vcmp.gt.s32.totalorder 0, %v222
    %v224 = vsel %vm223, 0, %v222
    %v225 = vsub.s32 32, %v224
    %v226 = vshll.u32 %v217, %v224
    %v227 = vshrl.u32 %v209, %v225
    %v228 = vor.u32 %v226, %v227
    %v229 = vsub.s32 4294967266, %v224
    %v230 = vadd.s32 %v229, 127
    %v231 = vshll.u32 %v230, 23
    %v232 = vor.u32 4788187, %v231
    %v233 = vand.u32 2147483647, %v232
    %v235 = vcvt.s32.f32 %v228
    %v236 = vmul.f32 %v235, %v233
    %v237 = vxor.u32 %v236, 2147483648
    %v238 = vsel %vm155, %v237, %v236
    %v239 = vsub.s32 4, %v215
    %v240 = vsel %vm155, %v239, %v215
    %v241 = vsel %vm154, %v149, %v238
    %v242 = vsel %vm154, 0, %v240
    %v243 = vcosq.f32.pop %v241
    %v244 = vsinq.f32.pop %v241
    %vm245 = vweird.f32 %v149
    %v246 = vadd.s32 %v242, 3
    %v247 = vand.u32 %v246, 3
    %vm248 = vcmp.lt.s32.totalorder %v247, 2
    %vm249 = vcmp.eq.s32.totalorder %v247, 0
    %v250 = vxor.u32 %v244, 2147483648
    %v251 = vsel %vm249, %v243, %v250
    %vm252 = vcmp.eq.s32.totalorder %v247, 2
    %v253 = vxor.u32 %v243, 2147483648
    %v254 = vsel %vm252, %v253, %v244
    %v255 = vsel %vm248, %v251, %v254
    %v256 = vsel %vm245, nan, %v255
    %v257 = vand.u32 2147483647, %v151
    %vm258 = vcmp.le.f32.partialorder %v257, 0.7853982
    %vm259 = vcmp.lt.s32.totalorder %v151, 0
    %v260 = vand.u32 %v151, 2139095040
    %v261 = vshrl.u32 %v260, 23
    %v262 = vsub.s32 %v261, 127
    %v263 = vand.u32 2147483647, %v151
    %v264 = vand.u32 %v263, 8388607
    %v265 = vor.u32 %v264, 8388608
    %v266 = vsub.s32 0, %v265
    %v267 = vadd.s32 %v262, 1
    %vm268 = vcmp.gt.s32.totalorder %v267, 0
    %v269 = vsel %vm268, %v267, 0
    %v270 = vshrl.u32 %v269, 5
    %v271 = vand.u32 %v269, 31
    %v272 = vsub.s32 32, %v271
    %v273 = vshrl.u32 683565275, %v272
    %v274 = vshll.u32 683565275, %v271
    %v275 = vshrl.u32 2475754826, %v272
    %v276 = vor.u32 %v274, %v275
    %v277 = vshll.u32 2475754826, %v271
    %v278 = vshrl.u32 2131351028, %v272
    %v279 = vor.u32 %v277, %v278
    %v280 = vshll.u32 2131351028, %v271
    %v281 = vshrl.u32 2102212464, %v272
    %v282 = vor.u32 %v280, %v281
    %v283 = vshll.u32 2102212464, %v271
    %v284 = vshrl.u32 920167782, %v272
    %v285 = vor.u32 %v283, %v284
    %v286 = vshll.u32 920167782, %v271
    %v287 = vshrl.u32 1326507024, %v272
    %v288 = vor.u32 %v286, %v287
    %vm289 = vcmp.lt.s32.totalorder %v270, 1
    %vm290 = vcmp.lt.s32.totalorder %v270, 2
    %vm291 = vcmp.lt.s32.totalorder %v270, 3
    %vm292 = vcmp.lt.s32.totalorder %v270, 4
    %v293 = vsel %vm289, %v273, %v276
    %v294 = vsel %vm292, %v282, 2102212464
    %v295 = vsel %vm291, %v279, %v294
    %v296 = vsel %vm290, %v293, %v295
    %v297 = vsel %vm289, %v276, %v279
    %v298 = vsel %vm292, %v285, 920167782
    %v299 = vsel %vm291, %v282, %v298
    %v300 = vsel %vm290, %v297, %v299
    %v301 = vsel %vm289, %v279, %v282
    %v302 = vsel %vm292, %v288, 1326507024
    %v303 = vsel %vm291, %v285, %v302
    %v304 = vsel %vm290, %v301, %v303
    %v305 = vshll.u32 %v265, 8
    %v306 = vmul.u32.u64.compose %v305, %v304
    %v307 = vextract.low.u32 %v306
    %v308 = vextract.high.u32 %v306
    %v309 = vmul.u32.u64.compose %v305, %v300
    %v310 = vextract.low.u32 %v309
    %v311 = vextract.high.u32 %v309
    %v312 = vmul.u32 %v305, %v296
    %v313 = vadd.s32 %v308, %v310
    %vm314 = vc.u32 %v308, %v310
    %v315 = vadd.s32 %v311, 1
    %v316 = vsel %vm314, %v315, %v311
    %v317 = vadd.s32 %v312, %v316
    %v318 = vadd.s32 %v317, 536870912
    %v319 = vshrl.u32 %v318, 30
    %v320 = vshll.u32 %v319, 30
    %v321 = vsub.s32 %v317, %v320
    %vm322 = vcmp.lt.s32.totalorder %v321, 0
    %v323 = vsub.s32 0, %v321
    %v324 = vsel %vm322, %v323, %v321
    %v325 = vclz %v324
    %v326 = vsub.s32 %v325, 2
    %vm327 = vcmp.gt.s32.totalorder 0, %v326
    %v328 = vsel %vm327, 0, %v326
    %v329 = vsub.s32 32, %v328
    %v330 = vshll.u32 %v321, %v328
    %v331 = vshrl.u32 %v313, %v329
    %v332 = vor.u32 %v330, %v331
    %v333 = vsub.s32 4294967266, %v328
    %v334 = vadd.s32 %v333, 127
    %v335 = vshll.u32 %v334, 23
    %v336 = vor.u32 4788187, %v335
    %v337 = vand.u32 2147483647, %v336
    %v339 = vcvt.s32.f32 %v332
    %v340 = vmul.f32 %v339, %v337
    %v341 = vxor.u32 %v340, 2147483648
    %v342 = vsel %vm259, %v341, %v340
    %v343 = vsub.s32 4, %v319
    %v344 = vsel %vm259, %v343, %v319
    %v345 = vsel %vm258, %v151, %v342
    %v346 = vsel %vm258, 0, %v344
    %v347 = vcosq.f32.pop %v345
    %v348 = vsinq.f32.pop %v345
    %vm349 = vweird.f32 %v151
    %v350 = vadd.s32 %v346, 3
    %v351 = vand.u32 %v350, 3
    %vm352 = vcmp.lt.s32.totalorder %v351, 2
    %vm353 = vcmp.eq.s32.totalorder %v351, 0
    %v354 = vxor.u32 %v348, 2147483648
    %v355 = vsel %vm353, %v347, %v354
    %vm356 = vcmp.eq.s32.totalorder %v351, 2
    %v357 = vxor.u32 %v347, 2147483648
    %v358 = vsel %vm356, %v357, %v348
    %v359 = vsel %vm352, %v355, %v358
    %v360 = vsel %vm349, nan, %v359
    %v361 = vpack.c.bf16 %v256, %v256
    %v362 = vpack.c.bf16 %v360, %v360
    %v363 = vld [vmem:[#allocation2] sm:$0xff]
    %v364 = vld [vmem:[#allocation2 + $0x8] sm:$0xff]
    %v365 = vld [vmem:[#allocation2 + $0x10] sm:$0xff]
    %v366 = vld [vmem:[#allocation2 + $0x18] sm:$0xff]
    %v367 = vld [vmem:[#allocation2 + $0x20] sm:$0xff]
    %v368 = vld [vmem:[#allocation2 + $0x28] sm:$0xff]
    %v369 = vld [vmem:[#allocation2 + $0x30] sm:$0xff]
    %v370 = vld [vmem:[#allocation2 + $0x38] sm:$0xff]
    %v371 = vld [vmem:[#allocation2 + $0x40] sm:$0xff]
    %v372 = vld [vmem:[#allocation2 + $0x48] sm:$0xff]
    %v373 = vld [vmem:[#allocation2 + $0x50] sm:$0xff]
    %v374 = vld [vmem:[#allocation2 + $0x58] sm:$0xff]
    %v375 = vld [vmem:[#allocation2 + $0x60] sm:$0xff]
    %v376 = vld [vmem:[#allocation2 + $0x68] sm:$0xff]
    %v377 = vld [vmem:[#allocation2 + $0x70] sm:$0xff]
    %v378 = vld [vmem:[#allocation2 + $0x78] sm:$0xff]
    %v379 = vld [vmem:[#allocation2 + $0x80] sm:$0xff]
    %v380 = vld [vmem:[#allocation2 + $0x88] sm:$0xff]
    %v381 = vld [vmem:[#allocation2 + $0x90] sm:$0xff]
    %v382 = vld [vmem:[#allocation2 + $0x98] sm:$0xff]
    %v383 = vld [vmem:[#allocation2 + $0xa0] sm:$0xff]
    %v384 = vld [vmem:[#allocation2 + $0xa8] sm:$0xff]
    %v385 = vld [vmem:[#allocation2 + $0xb0] sm:$0xff]
    %v386 = vld [vmem:[#allocation2 + $0xb8] sm:$0xff]
    %v387 = vld [vmem:[#allocation2 + $0xc0] sm:$0xff]
    %v388 = vld [vmem:[#allocation2 + $0xc8] sm:$0xff]
    %v389 = vld [vmem:[#allocation2 + $0xd0] sm:$0xff]
    %v390 = vld [vmem:[#allocation2 + $0xd8] sm:$0xff]
    %v391 = vld [vmem:[#allocation2 + $0xe0] sm:$0xff]
    %v392 = vld [vmem:[#allocation2 + $0xe8] sm:$0xff]
    %v393 = vld [vmem:[#allocation2 + $0xf0] sm:$0xff]
    %v394 = vld [vmem:[#allocation2 + $0xf8] sm:$0xff]
    %v395 = vld [vmem:[%s4] sm:$0x3]
    %v397 = vlaneseq
    %v398 = vshrl.u32 %v397, 7
    %v399 = vsub.s32 0, %v398
    %v400 = vrot.slane %v395, %v399
    %v401 = vlaneseq
    %v402 = vshrl.u32 %v401, 7
    %v403 = vsub.s32 1, %v402
    %v404 = vrot.slane %v395, %v403
    %v439 = vunpack.c.l.b16 %v363
    %v440 = vunpack.c.h.b16 %v363
    %v441 = vunpack.c.l.b16 %v364
    %v442 = vunpack.c.h.b16 %v364
    %v443 = vunpack.c.l.b16 %v365
    %v444 = vunpack.c.h.b16 %v365
    %v445 = vunpack.c.l.b16 %v366
    %v446 = vunpack.c.h.b16 %v366
    %v447 = vunpack.c.l.b16 %v367
    %v448 = vunpack.c.h.b16 %v367
    %v449 = vunpack.c.l.b16 %v368
    %v450 = vunpack.c.h.b16 %v368
    %v451 = vunpack.c.l.b16 %v369
    %v452 = vunpack.c.h.b16 %v369
    %v453 = vunpack.c.l.b16 %v370
    %v454 = vunpack.c.h.b16 %v370
    %v455 = vunpack.c.l.b16 %v371
    %v456 = vunpack.c.h.b16 %v371
    %v457 = vunpack.c.l.b16 %v372
    %v458 = vunpack.c.h.b16 %v372
    %v459 = vunpack.c.l.b16 %v373
    %v460 = vunpack.c.h.b16 %v373
    %v461 = vunpack.c.l.b16 %v374
    %v462 = vunpack.c.h.b16 %v374
    %v463 = vunpack.c.l.b16 %v375
    %v464 = vunpack.c.h.b16 %v375
    %v465 = vunpack.c.l.b16 %v376
    %v466 = vunpack.c.h.b16 %v376
    %v467 = vunpack.c.l.b16 %v377
    %v468 = vunpack.c.h.b16 %v377
    %v469 = vunpack.c.l.b16 %v378
    %v470 = vunpack.c.h.b16 %v378
    %v471 = vunpack.c.l.b16 %v379
    %v472 = vunpack.c.h.b16 %v379
    %v473 = vunpack.c.l.b16 %v380
    %v474 = vunpack.c.h.b16 %v380
    %v475 = vunpack.c.l.b16 %v381
    %v476 = vunpack.c.h.b16 %v381
    %v477 = vunpack.c.l.b16 %v382
    %v478 = vunpack.c.h.b16 %v382
    %v479 = vunpack.c.l.b16 %v383
    %v480 = vunpack.c.h.b16 %v383
    %v481 = vunpack.c.l.b16 %v384
    %v482 = vunpack.c.h.b16 %v384
    %v483 = vunpack.c.l.b16 %v385
    %v484 = vunpack.c.h.b16 %v385
    %v485 = vunpack.c.l.b16 %v386
    %v486 = vunpack.c.h.b16 %v386
    %v487 = vunpack.c.l.b16 %v387
    %v488 = vunpack.c.h.b16 %v387
    %v489 = vunpack.c.l.b16 %v388
    %v490 = vunpack.c.h.b16 %v388
    %v491 = vunpack.c.l.b16 %v389
    %v492 = vunpack.c.h.b16 %v389
    %v493 = vunpack.c.l.b16 %v390
    %v494 = vunpack.c.h.b16 %v390
    %v495 = vunpack.c.l.b16 %v391
    %v496 = vunpack.c.h.b16 %v391
    %v497 = vunpack.c.l.b16 %v392
    %v498 = vunpack.c.h.b16 %v392
    %v499 = vunpack.c.l.b16 %v393
    %v500 = vunpack.c.h.b16 %v393
    %v501 = vunpack.c.l.b16 %v394
    %v502 = vunpack.c.h.b16 %v394
    %v503 = vpack.c.b16 %v441, %v439
    %v504 = vpack.c.b16 %v442, %v440
    %v505 = vpack.c.b16 %v445, %v443
    %v506 = vpack.c.b16 %v446, %v444
    %v507 = vpack.c.b16 %v449, %v447
    %v508 = vpack.c.b16 %v450, %v448
    %v509 = vpack.c.b16 %v453, %v451
    %v510 = vpack.c.b16 %v454, %v452
    %v511 = vpack.c.b16 %v457, %v455
    %v512 = vpack.c.b16 %v458, %v456
    %v513 = vpack.c.b16 %v461, %v459
    %v514 = vpack.c.b16 %v462, %v460
    %v515 = vpack.c.b16 %v465, %v463
    %v516 = vpack.c.b16 %v466, %v464
    %v517 = vpack.c.b16 %v469, %v467
    %v518 = vpack.c.b16 %v470, %v468
    %v519 = vpack.c.b16 %v473, %v471
    %v520 = vpack.c.b16 %v474, %v472
    %v521 = vpack.c.b16 %v477, %v475
    %v522 = vpack.c.b16 %v478, %v476
    %v523 = vpack.c.b16 %v481, %v479
    %v524 = vpack.c.b16 %v482, %v480
    %v525 = vpack.c.b16 %v485, %v483
    %v526 = vpack.c.b16 %v486, %v484
    %v527 = vpack.c.b16 %v489, %v487
    %v528 = vpack.c.b16 %v490, %v488
    %v529 = vpack.c.b16 %v493, %v491
    %v530 = vpack.c.b16 %v494, %v492
    %v531 = vpack.c.b16 %v497, %v495
    %v532 = vpack.c.b16 %v498, %v496
    %v533 = vpack.c.b16 %v501, %v499
    %v534 = vpack.c.b16 %v502, %v500
    %567 = vmatprep.subr.bf16.mxu0 %v504
    %568 = vmatpush1.bf16.msra.mxu0 %v503
    %569 = vmatprep.subr.bf16.mxu0 %v506
    %570 = vmatpush1.bf16.msra.mxu0 %v505
    %571 = vmatprep.subr.bf16.mxu0 %v508
    %572 = vmatpush1.bf16.msra.mxu0 %v507
    %573 = vmatprep.subr.bf16.mxu0 %v510
    %574 = vmatpush1.bf16.msra.mxu0 %v509
    %575 = vmatprep.subr.bf16.mxu0 %v512
    %576 = vmatpush1.bf16.msra.mxu0 %v511
    %577 = vmatprep.subr.bf16.mxu0 %v514
    %578 = vmatpush1.bf16.msra.mxu0 %v513
    %579 = vmatprep.subr.bf16.mxu0 %v516
    %580 = vmatpush1.bf16.msra.mxu0 %v515
    %581 = vmatprep.subr.bf16.mxu0 %v518
    %582 = vmatpush1.bf16.msra.mxu0 %v517
    %583 = vmatprep.subr.bf16.mxu0 %v520
    %584 = vmatpush1.bf16.msra.mxu0 %v519
    %585 = vmatprep.subr.bf16.mxu0 %v522
    %586 = vmatpush1.bf16.msra.mxu0 %v521
    %587 = vmatprep.subr.bf16.mxu0 %v524
    %588 = vmatpush1.bf16.msra.mxu0 %v523
    %589 = vmatprep.subr.bf16.mxu0 %v526
    %590 = vmatpush1.bf16.msra.mxu0 %v525
    %591 = vmatprep.subr.bf16.mxu0 %v528
    %592 = vmatpush1.bf16.msra.mxu0 %v527
    %593 = vmatprep.subr.bf16.mxu0 %v530
    %594 = vmatpush1.bf16.msra.mxu0 %v529
    %595 = vmatprep.subr.bf16.mxu0 %v532
    %596 = vmatpush1.bf16.msra.mxu0 %v531
    %597 = vmatprep.subr.bf16.mxu0 %v534
    %598 = vmatpush1.bf16.msra.mxu0 %v533
    %599 = vmatprep.mubr.bf16.mxu0 %v362
    %600 = vmatmul.mubr.bf16.gmra.mrb[0].mxu0 %v361
    %v601 = vpop.f32.mrb[0].mxu0
    %v602 = vadd.f32 %v400, %v601
    %v603 = vpop.f32.mrb[0].mxu0
    %v604 = vadd.f32 %v404, %v603
    %v605 = vpop.f32.mrb[0].mxu0
    %v606 = vpop.f32.mrb[0].mxu0
    %607 = vdwg.mxu0
    %v608 = vand.u32 2147483647, %v602
    %vm609 = vcmp.le.f32.partialorder %v608, 0.7853982
    %vm610 = vcmp.lt.s32.totalorder %v602, 0
    %v611 = vand.u32 %v602, 2139095040
    %v612 = vshrl.u32 %v611, 23
    %v613 = vsub.s32 %v612, 127
    %v614 = vand.u32 2147483647, %v602
    %v615 = vand.u32 %v614, 8388607
    %v616 = vor.u32 %v615, 8388608
    %v617 = vsub.s32 0, %v616
    %v618 = vadd.s32 %v613, 1
    %vm619 = vcmp.gt.s32.totalorder %v618, 0
    %v620 = vsel %vm619, %v618, 0
    %v621 = vshrl.u32 %v620, 5
    %v622 = vand.u32 %v620, 31
    %v623 = vsub.s32 32, %v622
    %v624 = vshrl.u32 683565275, %v623
    %v625 = vshll.u32 683565275, %v622
    %v626 = vshrl.u32 2475754826, %v623
    %v627 = vor.u32 %v625, %v626
    %v628 = vshll.u32 2475754826, %v622
    %v629 = vshrl.u32 2131351028, %v623
    %v630 = vor.u32 %v628, %v629
    %v631 = vshll.u32 2131351028, %v622
    %v632 = vshrl.u32 2102212464, %v623
    %v633 = vor.u32 %v631, %v632
    %v634 = vshll.u32 2102212464, %v622
    %v635 = vshrl.u32 920167782, %v623
    %v636 = vor.u32 %v634, %v635
    %v637 = vshll.u32 920167782, %v622
    %v638 = vshrl.u32 1326507024, %v623
    %v639 = vor.u32 %v637, %v638
    %vm640 = vcmp.lt.s32.totalorder %v621, 1
    %vm641 = vcmp.lt.s32.totalorder %v621, 2
    %vm642 = vcmp.lt.s32.totalorder %v621, 3
    %vm643 = vcmp.lt.s32.totalorder %v621, 4
    %v644 = vsel %vm640, %v624, %v627
    %v645 = vsel %vm643, %v633, 2102212464
    %v646 = vsel %vm642, %v630, %v645
    %v647 = vsel %vm641, %v644, %v646
    %v648 = vsel %vm640, %v627, %v630
    %v649 = vsel %vm643, %v636, 920167782
    %v650 = vsel %vm642, %v633, %v649
    %v651 = vsel %vm641, %v648, %v650
    %v652 = vsel %vm640, %v630, %v633
    %v653 = vsel %vm643, %v639, 1326507024
    %v654 = vsel %vm642, %v636, %v653
    %v655 = vsel %vm641, %v652, %v654
    %v656 = vshll.u32 %v616, 8
    %v657 = vmul.u32.u64.compose %v656, %v655
    %v658 = vextract.low.u32 %v657
    %v659 = vextract.high.u32 %v657
    %v660 = vmul.u32.u64.compose %v656, %v651
    %v661 = vextract.low.u32 %v660
    %v662 = vextract.high.u32 %v660
    %v663 = vmul.u32 %v656, %v647
    %v664 = vadd.s32 %v659, %v661
    %vm665 = vc.u32 %v659, %v661
    %v666 = vadd.s32 %v662, 1
    %v667 = vsel %vm665, %v666, %v662
    %v668 = vadd.s32 %v663, %v667
    %v669 = vadd.s32 %v668, 536870912
    %v670 = vshrl.u32 %v669, 30
    %v671 = vshll.u32 %v670, 30
    %v672 = vsub.s32 %v668, %v671
    %vm673 = vcmp.lt.s32.totalorder %v672, 0
    %v674 = vsub.s32 0, %v672
    %v675 = vsel %vm673, %v674, %v672
    %v676 = vclz %v675
    %v677 = vsub.s32 %v676, 2
    %vm678 = vcmp.gt.s32.totalorder 0, %v677
    %v679 = vsel %vm678, 0, %v677
    %v680 = vsub.s32 32, %v679
    %v681 = vshll.u32 %v672, %v679
    %v682 = vshrl.u32 %v664, %v680
    %v683 = vor.u32 %v681, %v682
    %v684 = vsub.s32 4294967266, %v679
    %v685 = vadd.s32 %v684, 127
    %v686 = vshll.u32 %v685, 23
    %v687 = vor.u32 4788187, %v686
    %v688 = vand.u32 2147483647, %v687
    %v690 = vcvt.s32.f32 %v683
    %v691 = vmul.f32 %v690, %v688
    %v692 = vxor.u32 %v691, 2147483648
    %v693 = vsel %vm610, %v692, %v691
    %v694 = vsub.s32 4, %v670
    %v695 = vsel %vm610, %v694, %v670
    %v696 = vsel %vm609, %v602, %v693
    %v697 = vsel %vm609, 0, %v695
    %v698 = vcosq.f32.pop %v696
    %v699 = vsinq.f32.pop %v696
    %vm700 = vweird.f32 %v602
    %v701 = vadd.s32 %v697, 3
    %v702 = vand.u32 %v701, 3
    %vm703 = vcmp.lt.s32.totalorder %v702, 2
    %vm704 = vcmp.eq.s32.totalorder %v702, 0
    %v705 = vxor.u32 %v699, 2147483648
    %v706 = vsel %vm704, %v698, %v705
    %vm707 = vcmp.eq.s32.totalorder %v702, 2
    %v708 = vxor.u32 %v698, 2147483648
    %v709 = vsel %vm707, %v708, %v699
    %v710 = vsel %vm703, %v706, %v709
    %v711 = vsel %vm700, nan, %v710
    %v712 = vand.u32 2147483647, %v604
    %vm713 = vcmp.le.f32.partialorder %v712, 0.7853982
    %vm714 = vcmp.lt.s32.totalorder %v604, 0
    %v715 = vand.u32 %v604, 2139095040
    %v716 = vshrl.u32 %v715, 23
    %v717 = vsub.s32 %v716, 127
    %v718 = vand.u32 2147483647, %v604
    %v719 = vand.u32 %v718, 8388607
    %v720 = vor.u32 %v719, 8388608
    %v721 = vsub.s32 0, %v720
    %v722 = vadd.s32 %v717, 1
    %vm723 = vcmp.gt.s32.totalorder %v722, 0
    %v724 = vsel %vm723, %v722, 0
    %v725 = vshrl.u32 %v724, 5
    %v726 = vand.u32 %v724, 31
    %v727 = vsub.s32 32, %v726
    %v728 = vshrl.u32 683565275, %v727
    %v729 = vshll.u32 683565275, %v726
    %v730 = vshrl.u32 2475754826, %v727
    %v731 = vor.u32 %v729, %v730
    %v732 = vshll.u32 2475754826, %v726
    %v733 = vshrl.u32 2131351028, %v727
    %v734 = vor.u32 %v732, %v733
    %v735 = vshll.u32 2131351028, %v726
    %v736 = vshrl.u32 2102212464, %v727
    %v737 = vor.u32 %v735, %v736
    %v738 = vshll.u32 2102212464, %v726
    %v739 = vshrl.u32 920167782, %v727
    %v740 = vor.u32 %v738, %v739
    %v741 = vshll.u32 920167782, %v726
    %v742 = vshrl.u32 1326507024, %v727
    %v743 = vor.u32 %v741, %v742
    %vm744 = vcmp.lt.s32.totalorder %v725, 1
    %vm745 = vcmp.lt.s32.totalorder %v725, 2
    %vm746 = vcmp.lt.s32.totalorder %v725, 3
    %vm747 = vcmp.lt.s32.totalorder %v725, 4
    %v748 = vsel %vm744, %v728, %v731
    %v749 = vsel %vm747, %v737, 2102212464
    %v750 = vsel %vm746, %v734, %v749
    %v751 = vsel %vm745, %v748, %v750
    %v752 = vsel %vm744, %v731, %v734
    %v753 = vsel %vm747, %v740, 920167782
    %v754 = vsel %vm746, %v737, %v753
    %v755 = vsel %vm745, %v752, %v754
    %v756 = vsel %vm744, %v734, %v737
    %v757 = vsel %vm747, %v743, 1326507024
    %v758 = vsel %vm746, %v740, %v757
    %v759 = vsel %vm745, %v756, %v758
    %v760 = vshll.u32 %v720, 8
    %v761 = vmul.u32.u64.compose %v760, %v759
    %v762 = vextract.low.u32 %v761
    %v763 = vextract.high.u32 %v761
    %v764 = vmul.u32.u64.compose %v760, %v755
    %v765 = vextract.low.u32 %v764
    %v766 = vextract.high.u32 %v764
    %v767 = vmul.u32 %v760, %v751
    %v768 = vadd.s32 %v763, %v765
    %vm769 = vc.u32 %v763, %v765
    %v770 = vadd.s32 %v766, 1
    %v771 = vsel %vm769, %v770, %v766
    %v772 = vadd.s32 %v767, %v771
    %v773 = vadd.s32 %v772, 536870912
    %v774 = vshrl.u32 %v773, 30
    %v775 = vshll.u32 %v774, 30
    %v776 = vsub.s32 %v772, %v775
    %vm777 = vcmp.lt.s32.totalorder %v776, 0
    %v778 = vsub.s32 0, %v776
    %v779 = vsel %vm777, %v778, %v776
    %v780 = vclz %v779
    %v781 = vsub.s32 %v780, 2
    %vm782 = vcmp.gt.s32.totalorder 0, %v781
    %v783 = vsel %vm782, 0, %v781
    %v784 = vsub.s32 32, %v783
    %v785 = vshll.u32 %v776, %v783
    %v786 = vshrl.u32 %v768, %v784
    %v787 = vor.u32 %v785, %v786
    %v788 = vsub.s32 4294967266, %v783
    %v789 = vadd.s32 %v788, 127
    %v790 = vshll.u32 %v789, 23
    %v791 = vor.u32 4788187, %v790
    %v792 = vand.u32 2147483647, %v791
    %v794 = vcvt.s32.f32 %v787
    %v795 = vmul.f32 %v794, %v792
    %v796 = vxor.u32 %v795, 2147483648
    %v797 = vsel %vm714, %v796, %v795
    %v798 = vsub.s32 4, %v774
    %v799 = vsel %vm714, %v798, %v774
    %v800 = vsel %vm713, %v604, %v797
    %v801 = vsel %vm713, 0, %v799
    %v802 = vcosq.f32.pop %v800
    %v803 = vsinq.f32.pop %v800
    %vm804 = vweird.f32 %v604
    %v805 = vadd.s32 %v801, 3
    %v806 = vand.u32 %v805, 3
    %vm807 = vcmp.lt.s32.totalorder %v806, 2
    %vm808 = vcmp.eq.s32.totalorder %v806, 0
    %v809 = vxor.u32 %v803, 2147483648
    %v810 = vsel %vm808, %v802, %v809
    %vm811 = vcmp.eq.s32.totalorder %v806, 2
    %v812 = vxor.u32 %v802, 2147483648
    %v813 = vsel %vm811, %v812, %v803
    %v814 = vsel %vm807, %v810, %v813
    %v815 = vsel %vm804, nan, %v814
    %v816 = vpack.c.bf16 %v711, %v711
    %v817 = vpack.c.bf16 %v815, %v815
    %v818 = vld [vmem:[#allocation4] sm:$0xff]
    %v819 = vld [vmem:[#allocation4 + $0x8] sm:$0xff]
    %v820 = vld [vmem:[#allocation4 + $0x10] sm:$0xff]
    %v821 = vld [vmem:[#allocation4 + $0x18] sm:$0xff]
    %v822 = vld [vmem:[#allocation4 + $0x20] sm:$0xff]
    %v823 = vld [vmem:[#allocation4 + $0x28] sm:$0xff]
    %v824 = vld [vmem:[#allocation4 + $0x30] sm:$0xff]
    %v825 = vld [vmem:[#allocation4 + $0x38] sm:$0xff]
    %v826 = vld [vmem:[#allocation4 + $0x40] sm:$0xff]
    %v827 = vld [vmem:[#allocation4 + $0x48] sm:$0xff]
    %v828 = vld [vmem:[#allocation4 + $0x50] sm:$0xff]
    %v829 = vld [vmem:[#allocation4 + $0x58] sm:$0xff]
    %v830 = vld [vmem:[#allocation4 + $0x60] sm:$0xff]
    %v831 = vld [vmem:[#allocation4 + $0x68] sm:$0xff]
    %v832 = vld [vmem:[#allocation4 + $0x70] sm:$0xff]
    %v833 = vld [vmem:[#allocation4 + $0x78] sm:$0xff]
    %v834 = vld [vmem:[#allocation4 + $0x80] sm:$0xff]
    %v835 = vld [vmem:[#allocation4 + $0x88] sm:$0xff]
    %v836 = vld [vmem:[#allocation4 + $0x90] sm:$0xff]
    %v837 = vld [vmem:[#allocation4 + $0x98] sm:$0xff]
    %v838 = vld [vmem:[#allocation4 + $0xa0] sm:$0xff]
    %v839 = vld [vmem:[#allocation4 + $0xa8] sm:$0xff]
    %v840 = vld [vmem:[#allocation4 + $0xb0] sm:$0xff]
    %v841 = vld [vmem:[#allocation4 + $0xb8] sm:$0xff]
    %v842 = vld [vmem:[#allocation4 + $0xc0] sm:$0xff]
    %v843 = vld [vmem:[#allocation4 + $0xc8] sm:$0xff]
    %v844 = vld [vmem:[#allocation4 + $0xd0] sm:$0xff]
    %v845 = vld [vmem:[#allocation4 + $0xd8] sm:$0xff]
    %v846 = vld [vmem:[#allocation4 + $0xe0] sm:$0xff]
    %v847 = vld [vmem:[#allocation4 + $0xe8] sm:$0xff]
    %v848 = vld [vmem:[#allocation4 + $0xf0] sm:$0xff]
    %v849 = vld [vmem:[#allocation4 + $0xf8] sm:$0xff]
    %v850 = vld [vmem:[%s6] sm:$0x3]
    %v852 = vlaneseq
    %v853 = vshrl.u32 %v852, 7
    %v854 = vsub.s32 0, %v853
    %v855 = vrot.slane %v850, %v854
    %v856 = vlaneseq
    %v857 = vshrl.u32 %v856, 7
    %v858 = vsub.s32 1, %v857
    %v859 = vrot.slane %v850, %v858
    %v894 = vunpack.c.l.b16 %v818
    %v895 = vunpack.c.h.b16 %v818
    %v896 = vunpack.c.l.b16 %v819
    %v897 = vunpack.c.h.b16 %v819
    %v898 = vunpack.c.l.b16 %v820
    %v899 = vunpack.c.h.b16 %v820
    %v900 = vunpack.c.l.b16 %v821
    %v901 = vunpack.c.h.b16 %v821
    %v902 = vunpack.c.l.b16 %v822
    %v903 = vunpack.c.h.b16 %v822
    %v904 = vunpack.c.l.b16 %v823
    %v905 = vunpack.c.h.b16 %v823
    %v906 = vunpack.c.l.b16 %v824
    %v907 = vunpack.c.h.b16 %v824
    %v908 = vunpack.c.l.b16 %v825
    %v909 = vunpack.c.h.b16 %v825
    %v910 = vunpack.c.l.b16 %v826
    %v911 = vunpack.c.h.b16 %v826
    %v912 = vunpack.c.l.b16 %v827
    %v913 = vunpack.c.h.b16 %v827
    %v914 = vunpack.c.l.b16 %v828
    %v915 = vunpack.c.h.b16 %v828
    %v916 = vunpack.c.l.b16 %v829
    %v917 = vunpack.c.h.b16 %v829
    %v918 = vunpack.c.l.b16 %v830
    %v919 = vunpack.c.h.b16 %v830
    %v920 = vunpack.c.l.b16 %v831
    %v921 = vunpack.c.h.b16 %v831
    %v922 = vunpack.c.l.b16 %v832
    %v923 = vunpack.c.h.b16 %v832
    %v924 = vunpack.c.l.b16 %v833
    %v925 = vunpack.c.h.b16 %v833
    %v926 = vunpack.c.l.b16 %v834
    %v927 = vunpack.c.h.b16 %v834
    %v928 = vunpack.c.l.b16 %v835
    %v929 = vunpack.c.h.b16 %v835
    %v930 = vunpack.c.l.b16 %v836
    %v931 = vunpack.c.h.b16 %v836
    %v932 = vunpack.c.l.b16 %v837
    %v933 = vunpack.c.h.b16 %v837
    %v934 = vunpack.c.l.b16 %v838
    %v935 = vunpack.c.h.b16 %v838
    %v936 = vunpack.c.l.b16 %v839
    %v937 = vunpack.c.h.b16 %v839
    %v938 = vunpack.c.l.b16 %v840
    %v939 = vunpack.c.h.b16 %v840
    %v940 = vunpack.c.l.b16 %v841
    %v941 = vunpack.c.h.b16 %v841
    %v942 = vunpack.c.l.b16 %v842
    %v943 = vunpack.c.h.b16 %v842
    %v944 = vunpack.c.l.b16 %v843
    %v945 = vunpack.c.h.b16 %v843
    %v946 = vunpack.c.l.b16 %v844
    %v947 = vunpack.c.h.b16 %v844
    %v948 = vunpack.c.l.b16 %v845
    %v949 = vunpack.c.h.b16 %v845
    %v950 = vunpack.c.l.b16 %v846
    %v951 = vunpack.c.h.b16 %v846
    %v952 = vunpack.c.l.b16 %v847
    %v953 = vunpack.c.h.b16 %v847
    %v954 = vunpack.c.l.b16 %v848
    %v955 = vunpack.c.h.b16 %v848
    %v956 = vunpack.c.l.b16 %v849
    %v957 = vunpack.c.h.b16 %v849
    %v958 = vpack.c.b16 %v896, %v894
    %v959 = vpack.c.b16 %v897, %v895
    %v960 = vpack.c.b16 %v900, %v898
    %v961 = vpack.c.b16 %v901, %v899
    %v962 = vpack.c.b16 %v904, %v902
    %v963 = vpack.c.b16 %v905, %v903
    %v964 = vpack.c.b16 %v908, %v906
    %v965 = vpack.c.b16 %v909, %v907
    %v966 = vpack.c.b16 %v912, %v910
    %v967 = vpack.c.b16 %v913, %v911
    %v968 = vpack.c.b16 %v916, %v914
    %v969 = vpack.c.b16 %v917, %v915
    %v970 = vpack.c.b16 %v920, %v918
    %v971 = vpack.c.b16 %v921, %v919
    %v972 = vpack.c.b16 %v924, %v922
    %v973 = vpack.c.b16 %v925, %v923
    %v974 = vpack.c.b16 %v928, %v926
    %v975 = vpack.c.b16 %v929, %v927
    %v976 = vpack.c.b16 %v932, %v930
    %v977 = vpack.c.b16 %v933, %v931
    %v978 = vpack.c.b16 %v936, %v934
    %v979 = vpack.c.b16 %v937, %v935
    %v980 = vpack.c.b16 %v940, %v938
    %v981 = vpack.c.b16 %v941, %v939
    %v982 = vpack.c.b16 %v944, %v942
    %v983 = vpack.c.b16 %v945, %v943
    %v984 = vpack.c.b16 %v948, %v946
    %v985 = vpack.c.b16 %v949, %v947
    %v986 = vpack.c.b16 %v952, %v950
    %v987 = vpack.c.b16 %v953, %v951
    %v988 = vpack.c.b16 %v956, %v954
    %v989 = vpack.c.b16 %v957, %v955
    %1022 = vmatprep.subr.bf16.mxu0 %v959
    %1023 = vmatpush1.bf16.msra.mxu0 %v958
    %1024 = vmatprep.subr.bf16.mxu0 %v961
    %1025 = vmatpush1.bf16.msra.mxu0 %v960
    %1026 = vmatprep.subr.bf16.mxu0 %v963
    %1027 = vmatpush1.bf16.msra.mxu0 %v962
    %1028 = vmatprep.subr.bf16.mxu0 %v965
    %1029 = vmatpush1.bf16.msra.mxu0 %v964
    %1030 = vmatprep.subr.bf16.mxu0 %v967
    %1031 = vmatpush1.bf16.msra.mxu0 %v966
    %1032 = vmatprep.subr.bf16.mxu0 %v969
    %1033 = vmatpush1.bf16.msra.mxu0 %v968
    %1034 = vmatprep.subr.bf16.mxu0 %v971
    %1035 = vmatpush1.bf16.msra.mxu0 %v970
    %1036 = vmatprep.subr.bf16.mxu0 %v973
    %1037 = vmatpush1.bf16.msra.mxu0 %v972
    %1038 = vmatprep.subr.bf16.mxu0 %v975
    %1039 = vmatpush1.bf16.msra.mxu0 %v974
    %1040 = vmatprep.subr.bf16.mxu0 %v977
    %1041 = vmatpush1.bf16.msra.mxu0 %v976
    %1042 = vmatprep.subr.bf16.mxu0 %v979
    %1043 = vmatpush1.bf16.msra.mxu0 %v978
    %1044 = vmatprep.subr.bf16.mxu0 %v981
    %1045 = vmatpush1.bf16.msra.mxu0 %v980
    %1046 = vmatprep.subr.bf16.mxu0 %v983
    %1047 = vmatpush1.bf16.msra.mxu0 %v982
    %1048 = vmatprep.subr.bf16.mxu0 %v985
    %1049 = vmatpush1.bf16.msra.mxu0 %v984
    %1050 = vmatprep.subr.bf16.mxu0 %v987
    %1051 = vmatpush1.bf16.msra.mxu0 %v986
    %1052 = vmatprep.subr.bf16.mxu0 %v989
    %1053 = vmatpush1.bf16.msra.mxu0 %v988
    %1054 = vmatprep.mubr.bf16.mxu0 %v817
    %1055 = vmatmul.mubr.bf16.gmra.mrb[0].mxu0 %v816
    %v1056 = vpop.f32.mrb[0].mxu0
    %v1057 = vadd.f32 %v855, %v1056
    %v1058 = vpop.f32.mrb[0].mxu0
    %v1059 = vadd.f32 %v859, %v1058
    %v1060 = vpop.f32.mrb[0].mxu0
    %v1061 = vpop.f32.mrb[0].mxu0
    %1062 = vdwg.mxu0
    %v1063 = vand.u32 2147483647, %v1057
    %vm1064 = vcmp.le.f32.partialorder %v1063, 0.7853982
    %vm1065 = vcmp.lt.s32.totalorder %v1057, 0
    %v1066 = vand.u32 %v1057, 2139095040
    %v1067 = vshrl.u32 %v1066, 23
    %v1068 = vsub.s32 %v1067, 127
    %v1069 = vand.u32 2147483647, %v1057
    %v1070 = vand.u32 %v1069, 8388607
    %v1071 = vor.u32 %v1070, 8388608
    %v1072 = vsub.s32 0, %v1071
    %v1073 = vadd.s32 %v1068, 1
    %vm1074 = vcmp.gt.s32.totalorder %v1073, 0
    %v1075 = vsel %vm1074, %v1073, 0
    %v1076 = vshrl.u32 %v1075, 5
    %v1077 = vand.u32 %v1075, 31
    %v1078 = vsub.s32 32, %v1077
    %v1079 = vshrl.u32 683565275, %v1078
    %v1080 = vshll.u32 683565275, %v1077
    %v1081 = vshrl.u32 2475754826, %v1078
    %v1082 = vor.u32 %v1080, %v1081
    %v1083 = vshll.u32 2475754826, %v1077
    %v1084 = vshrl.u32 2131351028, %v1078
    %v1085 = vor.u32 %v1083, %v1084
    %v1086 = vshll.u32 2131351028, %v1077
    %v1087 = vshrl.u32 2102212464, %v1078
    %v1088 = vor.u32 %v1086, %v1087
    %v1089 = vshll.u32 2102212464, %v1077
    %v1090 = vshrl.u32 920167782, %v1078
    %v1091 = vor.u32 %v1089, %v1090
    %v1092 = vshll.u32 920167782, %v1077
    %v1093 = vshrl.u32 1326507024, %v1078
    %v1094 = vor.u32 %v1092, %v1093
    %vm1095 = vcmp.lt.s32.totalorder %v1076, 1
    %vm1096 = vcmp.lt.s32.totalorder %v1076, 2
    %vm1097 = vcmp.lt.s32.totalorder %v1076, 3
    %vm1098 = vcmp.lt.s32.totalorder %v1076, 4
    %v1099 = vsel %vm1095, %v1079, %v1082
    %v1100 = vsel %vm1098, %v1088, 2102212464
    %v1101 = vsel %vm1097, %v1085, %v1100
    %v1102 = vsel %vm1096, %v1099, %v1101
    %v1103 = vsel %vm1095, %v1082, %v1085
    %v1104 = vsel %vm1098, %v1091, 920167782
    %v1105 = vsel %vm1097, %v1088, %v1104
    %v1106 = vsel %vm1096, %v1103, %v1105
    %v1107 = vsel %vm1095, %v1085, %v1088
    %v1108 = vsel %vm1098, %v1094, 1326507024
    %v1109 = vsel %vm1097, %v1091, %v1108
    %v1110 = vsel %vm1096, %v1107, %v1109
    %v1111 = vshll.u32 %v1071, 8
    %v1112 = vmul.u32.u64.compose %v1111, %v1110
    %v1113 = vextract.low.u32 %v1112
    %v1114 = vextract.high.u32 %v1112
    %v1115 = vmul.u32.u64.compose %v1111, %v1106
    %v1116 = vextract.low.u32 %v1115
    %v1117 = vextract.high.u32 %v1115
    %v1118 = vmul.u32 %v1111, %v1102
    %v1119 = vadd.s32 %v1114, %v1116
    %vm1120 = vc.u32 %v1114, %v1116
    %v1121 = vadd.s32 %v1117, 1
    %v1122 = vsel %vm1120, %v1121, %v1117
    %v1123 = vadd.s32 %v1118, %v1122
    %v1124 = vadd.s32 %v1123, 536870912
    %v1125 = vshrl.u32 %v1124, 30
    %v1126 = vshll.u32 %v1125, 30
    %v1127 = vsub.s32 %v1123, %v1126
    %vm1128 = vcmp.lt.s32.totalorder %v1127, 0
    %v1129 = vsub.s32 0, %v1127
    %v1130 = vsel %vm1128, %v1129, %v1127
    %v1131 = vclz %v1130
    %v1132 = vsub.s32 %v1131, 2
    %vm1133 = vcmp.gt.s32.totalorder 0, %v1132
    %v1134 = vsel %vm1133, 0, %v1132
    %v1135 = vsub.s32 32, %v1134
    %v1136 = vshll.u32 %v1127, %v1134
    %v1137 = vshrl.u32 %v1119, %v1135
    %v1138 = vor.u32 %v1136, %v1137
    %v1139 = vsub.s32 4294967266, %v1134
    %v1140 = vadd.s32 %v1139, 127
    %v1141 = vshll.u32 %v1140, 23
    %v1142 = vor.u32 4788187, %v1141
    %v1143 = vand.u32 2147483647, %v1142
    %v1145 = vcvt.s32.f32 %v1138
    %v1146 = vmul.f32 %v1145, %v1143
    %v1147 = vxor.u32 %v1146, 2147483648
    %v1148 = vsel %vm1065, %v1147, %v1146
    %v1149 = vsub.s32 4, %v1125
    %v1150 = vsel %vm1065, %v1149, %v1125
    %v1151 = vsel %vm1064, %v1057, %v1148
    %v1152 = vsel %vm1064, 0, %v1150
    %v1153 = vcosq.f32.pop %v1151
    %v1154 = vsinq.f32.pop %v1151
    %vm1155 = vweird.f32 %v1057
    %v1156 = vadd.s32 %v1152, 3
    %v1157 = vand.u32 %v1156, 3
    %vm1158 = vcmp.lt.s32.totalorder %v1157, 2
    %vm1159 = vcmp.eq.s32.totalorder %v1157, 0
    %v1160 = vxor.u32 %v1154, 2147483648
    %v1161 = vsel %vm1159, %v1153, %v1160
    %vm1162 = vcmp.eq.s32.totalorder %v1157, 2
    %v1163 = vxor.u32 %v1153, 2147483648
    %v1164 = vsel %vm1162, %v1163, %v1154
    %v1165 = vsel %vm1158, %v1161, %v1164
    %v1166 = vsel %vm1155, nan, %v1165
    %v1167 = vand.u32 2147483647, %v1059
    %vm1168 = vcmp.le.f32.partialorder %v1167, 0.7853982
    %vm1169 = vcmp.lt.s32.totalorder %v1059, 0
    %v1170 = vand.u32 %v1059, 2139095040
    %v1171 = vshrl.u32 %v1170, 23
    %v1172 = vsub.s32 %v1171, 127
    %v1173 = vand.u32 2147483647, %v1059
    %v1174 = vand.u32 %v1173, 8388607
    %v1175 = vor.u32 %v1174, 8388608
    %v1176 = vsub.s32 0, %v1175
    %v1177 = vadd.s32 %v1172, 1
    %vm1178 = vcmp.gt.s32.totalorder %v1177, 0
    %v1179 = vsel %vm1178, %v1177, 0
    %v1180 = vshrl.u32 %v1179, 5
    %v1181 = vand.u32 %v1179, 31
    %v1182 = vsub.s32 32, %v1181
    %v1183 = vshrl.u32 683565275, %v1182
    %v1184 = vshll.u32 683565275, %v1181
    %v1185 = vshrl.u32 2475754826, %v1182
    %v1186 = vor.u32 %v1184, %v1185
    %v1187 = vshll.u32 2475754826, %v1181
    %v1188 = vshrl.u32 2131351028, %v1182
    %v1189 = vor.u32 %v1187, %v1188
    %v1190 = vshll.u32 2131351028, %v1181
    %v1191 = vshrl.u32 2102212464, %v1182
    %v1192 = vor.u32 %v1190, %v1191
    %v1193 = vshll.u32 2102212464, %v1181
    %v1194 = vshrl.u32 920167782, %v1182
    %v1195 = vor.u32 %v1193, %v1194
    %v1196 = vshll.u32 920167782, %v1181
    %v1197 = vshrl.u32 1326507024, %v1182
    %v1198 = vor.u32 %v1196, %v1197
    %vm1199 = vcmp.lt.s32.totalorder %v1180, 1
    %vm1200 = vcmp.lt.s32.totalorder %v1180, 2
    %vm1201 = vcmp.lt.s32.totalorder %v1180, 3
    %vm1202 = vcmp.lt.s32.totalorder %v1180, 4
    %v1203 = vsel %vm1199, %v1183, %v1186
    %v1204 = vsel %vm1202, %v1192, 2102212464
    %v1205 = vsel %vm1201, %v1189, %v1204
    %v1206 = vsel %vm1200, %v1203, %v1205
    %v1207 = vsel %vm1199, %v1186, %v1189
    %v1208 = vsel %vm1202, %v1195, 920167782
    %v1209 = vsel %vm1201, %v1192, %v1208
    %v1210 = vsel %vm1200, %v1207, %v1209
    %v1211 = vsel %vm1199, %v1189, %v1192
    %v1212 = vsel %vm1202, %v1198, 1326507024
    %v1213 = vsel %vm1201, %v1195, %v1212
    %v1214 = vsel %vm1200, %v1211, %v1213
    %v1215 = vshll.u32 %v1175, 8
    %v1216 = vmul.u32.u64.compose %v1215, %v1214
    %v1217 = vextract.low.u32 %v1216
    %v1218 = vextract.high.u32 %v1216
    %v1219 = vmul.u32.u64.compose %v1215, %v1210
    %v1220 = vextract.low.u32 %v1219
    %v1221 = vextract.high.u32 %v1219
    %v1222 = vmul.u32 %v1215, %v1206
    %v1223 = vadd.s32 %v1218, %v1220
    %vm1224 = vc.u32 %v1218, %v1220
    %v1225 = vadd.s32 %v1221, 1
    %v1226 = vsel %vm1224, %v1225, %v1221
    %v1227 = vadd.s32 %v1222, %v1226
    %v1228 = vadd.s32 %v1227, 536870912
    %v1229 = vshrl.u32 %v1228, 30
    %v1230 = vshll.u32 %v1229, 30
    %v1231 = vsub.s32 %v1227, %v1230
    %vm1232 = vcmp.lt.s32.totalorder %v1231, 0
    %v1233 = vsub.s32 0, %v1231
    %v1234 = vsel %vm1232, %v1233, %v1231
    %v1235 = vclz %v1234
    %v1236 = vsub.s32 %v1235, 2
    %vm1237 = vcmp.gt.s32.totalorder 0, %v1236
    %v1238 = vsel %vm1237, 0, %v1236
    %v1239 = vsub.s32 32, %v1238
    %v1240 = vshll.u32 %v1231, %v1238
    %v1241 = vshrl.u32 %v1223, %v1239
    %v1242 = vor.u32 %v1240, %v1241
    %v1243 = vsub.s32 4294967266, %v1238
    %v1244 = vadd.s32 %v1243, 127
    %v1245 = vshll.u32 %v1244, 23
    %v1246 = vor.u32 4788187, %v1245
    %v1247 = vand.u32 2147483647, %v1246
    %v1249 = vcvt.s32.f32 %v1242
    %v1250 = vmul.f32 %v1249, %v1247
    %v1251 = vxor.u32 %v1250, 2147483648
    %v1252 = vsel %vm1169, %v1251, %v1250
    %v1253 = vsub.s32 4, %v1229
    %v1254 = vsel %vm1169, %v1253, %v1229
    %v1255 = vsel %vm1168, %v1059, %v1252
    %v1256 = vsel %vm1168, 0, %v1254
    %v1257 = vcosq.f32.pop %v1255
    %v1258 = vsinq.f32.pop %v1255
    %vm1259 = vweird.f32 %v1059
    %v1260 = vadd.s32 %v1256, 3
    %v1261 = vand.u32 %v1260, 3
    %vm1262 = vcmp.lt.s32.totalorder %v1261, 2
    %vm1263 = vcmp.eq.s32.totalorder %v1261, 0
    %v1264 = vxor.u32 %v1258, 2147483648
    %v1265 = vsel %vm1263, %v1257, %v1264
    %vm1266 = vcmp.eq.s32.totalorder %v1261, 2
    %v1267 = vxor.u32 %v1257, 2147483648
    %v1268 = vsel %vm1266, %v1267, %v1258
    %v1269 = vsel %vm1262, %v1265, %v1268
    %v1270 = vsel %vm1259, nan, %v1269
    %v1271 = vpack.c.bf16 %v1166, %v1166
    %v1272 = vpack.c.bf16 %v1270, %v1270
    %v1273 = vld [vmem:[%s7] sm:$0xf]
    %v1274 = vld [vmem:[%s7 + $0x4] sm:$0xf]
    %v1275 = vld [vmem:[%s7 + $0x8] sm:$0xf]
    %v1276 = vld [vmem:[%s7 + $0xc] sm:$0xf]
    %v1277 = vld [vmem:[%s7 + $0x10] sm:$0xf]
    %v1278 = vld [vmem:[%s7 + $0x14] sm:$0xf]
    %v1279 = vld [vmem:[%s7 + $0x18] sm:$0xf]
    %v1280 = vld [vmem:[%s7 + $0x1c] sm:$0xf]
    %v1281 = vld [vmem:[%s7 + $0x20] sm:$0xf]
    %v1282 = vld [vmem:[%s7 + $0x24] sm:$0xf]
    %v1283 = vld [vmem:[%s7 + $0x28] sm:$0xf]
    %v1284 = vld [vmem:[%s7 + $0x2c] sm:$0xf]
    %v1285 = vld [vmem:[%s7 + $0x30] sm:$0xf]
    %v1286 = vld [vmem:[%s7 + $0x34] sm:$0xf]
    %v1287 = vld [vmem:[%s7 + $0x38] sm:$0xf]
    %v1288 = vld [vmem:[%s7 + $0x3c] sm:$0xf]
    %v1289 = vld [vmem:[%s7 + $0x40] sm:$0xf]
    %v1290 = vld [vmem:[%s7 + $0x44] sm:$0xf]
    %v1291 = vld [vmem:[%s7 + $0x48] sm:$0xf]
    %v1292 = vld [vmem:[%s7 + $0x4c] sm:$0xf]
    %v1293 = vld [vmem:[%s7 + $0x50] sm:$0xf]
    %v1294 = vld [vmem:[%s7 + $0x54] sm:$0xf]
    %v1295 = vld [vmem:[%s7 + $0x58] sm:$0xf]
    %v1296 = vld [vmem:[%s7 + $0x5c] sm:$0xf]
    %v1297 = vld [vmem:[%s7 + $0x60] sm:$0xf]
    %v1298 = vld [vmem:[%s7 + $0x64] sm:$0xf]
    %v1299 = vld [vmem:[%s7 + $0x68] sm:$0xf]
    %v1300 = vld [vmem:[%s7 + $0x6c] sm:$0xf]
    %v1301 = vld [vmem:[%s7 + $0x70] sm:$0xf]
    %v1302 = vld [vmem:[%s7 + $0x74] sm:$0xf]
    %v1303 = vld [vmem:[%s7 + $0x78] sm:$0xf]
    %v1304 = vld [vmem:[%s7 + $0x7c] sm:$0xf]
    %v1305 = vld [vmem:[%s8] sm:$0x1]
    %v1307 = vlaneseq
    %v1308 = vshrl.u32 %v1307, 7
    %v1309 = vsub.s32 0, %v1308
    %v1310 = vrot.slane %v1305, %v1309
    %v1344 = vunpack.c.l.b16 %v1273
    %v1345 = vunpack.c.l.b16 %v1274
    %v1346 = vunpack.c.l.b16 %v1275
    %v1347 = vunpack.c.l.b16 %v1276
    %v1348 = vunpack.c.l.b16 %v1277
    %v1349 = vunpack.c.l.b16 %v1278
    %v1350 = vunpack.c.l.b16 %v1279
    %v1351 = vunpack.c.l.b16 %v1280
    %v1352 = vunpack.c.l.b16 %v1281
    %v1353 = vunpack.c.l.b16 %v1282
    %v1354 = vunpack.c.l.b16 %v1283
    %v1355 = vunpack.c.l.b16 %v1284
    %v1356 = vunpack.c.l.b16 %v1285
    %v1357 = vunpack.c.l.b16 %v1286
    %v1358 = vunpack.c.l.b16 %v1287
    %v1359 = vunpack.c.l.b16 %v1288
    %v1360 = vunpack.c.l.b16 %v1289
    %v1361 = vunpack.c.l.b16 %v1290
    %v1362 = vunpack.c.l.b16 %v1291
    %v1363 = vunpack.c.l.b16 %v1292
    %v1364 = vunpack.c.l.b16 %v1293
    %v1365 = vunpack.c.l.b16 %v1294
    %v1366 = vunpack.c.l.b16 %v1295
    %v1367 = vunpack.c.l.b16 %v1296
    %v1368 = vunpack.c.l.b16 %v1297
    %v1369 = vunpack.c.l.b16 %v1298
    %v1370 = vunpack.c.l.b16 %v1299
    %v1371 = vunpack.c.l.b16 %v1300
    %v1372 = vunpack.c.l.b16 %v1301
    %v1373 = vunpack.c.l.b16 %v1302
    %v1374 = vunpack.c.l.b16 %v1303
    %v1375 = vunpack.c.l.b16 %v1304
    %v1376 = vpack.c.b16 %v1345, %v1344
    %v1377 = vpack.c.b16 %v1347, %v1346
    %v1378 = vpack.c.b16 %v1349, %v1348
    %v1379 = vpack.c.b16 %v1351, %v1350
    %v1380 = vpack.c.b16 %v1353, %v1352
    %v1381 = vpack.c.b16 %v1355, %v1354
    %v1382 = vpack.c.b16 %v1357, %v1356
    %v1383 = vpack.c.b16 %v1359, %v1358
    %v1384 = vpack.c.b16 %v1361, %v1360
    %v1385 = vpack.c.b16 %v1363, %v1362
    %v1386 = vpack.c.b16 %v1365, %v1364
    %v1387 = vpack.c.b16 %v1367, %v1366
    %v1388 = vpack.c.b16 %v1369, %v1368
    %v1389 = vpack.c.b16 %v1371, %v1370
    %v1390 = vpack.c.b16 %v1373, %v1372
    %v1391 = vpack.c.b16 %v1375, %v1374
    %1408 = vmatprep.subr.bf16.mxu0 0
    %1409 = vmatpush1.bf16.msra.mxu0 %v1376
    %1410 = vmatprep.subr.bf16.mxu0 0
    %1411 = vmatpush1.bf16.msra.mxu0 %v1377
    %1412 = vmatprep.subr.bf16.mxu0 0
    %1413 = vmatpush1.bf16.msra.mxu0 %v1378
    %1414 = vmatprep.subr.bf16.mxu0 0
    %1415 = vmatpush1.bf16.msra.mxu0 %v1379
    %1416 = vmatprep.subr.bf16.mxu0 0
    %1417 = vmatpush1.bf16.msra.mxu0 %v1380
    %1418 = vmatprep.subr.bf16.mxu0 0
    %1419 = vmatpush1.bf16.msra.mxu0 %v1381
    %1420 = vmatprep.subr.bf16.mxu0 0
    %1421 = vmatpush1.bf16.msra.mxu0 %v1382
    %1422 = vmatprep.subr.bf16.mxu0 0
    %1423 = vmatpush1.bf16.msra.mxu0 %v1383
    %1424 = vmatprep.subr.bf16.mxu0 0
    %1425 = vmatpush1.bf16.msra.mxu0 %v1384
    %1426 = vmatprep.subr.bf16.mxu0 0
    %1427 = vmatpush1.bf16.msra.mxu0 %v1385
    %1428 = vmatprep.subr.bf16.mxu0 0
    %1429 = vmatpush1.bf16.msra.mxu0 %v1386
    %1430 = vmatprep.subr.bf16.mxu0 0
    %1431 = vmatpush1.bf16.msra.mxu0 %v1387
    %1432 = vmatprep.subr.bf16.mxu0 0
    %1433 = vmatpush1.bf16.msra.mxu0 %v1388
    %1434 = vmatprep.subr.bf16.mxu0 0
    %1435 = vmatpush1.bf16.msra.mxu0 %v1389
    %1436 = vmatprep.subr.bf16.mxu0 0
    %1437 = vmatpush1.bf16.msra.mxu0 %v1390
    %1438 = vmatprep.subr.bf16.mxu0 0
    %1439 = vmatpush1.bf16.msra.mxu0 %v1391
    %1440 = vmatprep.mubr.bf16.mxu0 %v1272
    %1441 = vmatmul.mubr.bf16.gmra.mrb[0].mxu0 %v1271
    %v1442 = vpop.f32.mrb[0].mxu0
    %v1443 = vadd.f32 %v1310, %v1442
    %v1444 = vpop.f32.mrb[0].mxu0
    %v1445 = vpop.f32.mrb[0].mxu0
    %v1446 = vpop.f32.mrb[0].mxu0
    %1447 = vdwg.mxu0
    %vm1448 = vcmask 261120
    %1449 = vst.msk [vmem:[%s9] sm:$0xff] %vm1448, %v1443
    // Predicated region
    $region46: #{net_forward.1} parent=1 // pred_check
      _
    $region47: #{net_forward.1} parent=1 // pred_check_branch
      %1451 = sbr.rel (0) target = $region49
    $region48: #{net_forward.1} parent=1 // pred_region
      _
    $region49: #{net_forward.1} parent=1 // pred_fallthru
      _
    // Predicated region
    $region50: #{net_forward.1} parent=1 // pred_check
      _
    $region51: #{net_forward.1} parent=1 // pred_check_branch
      %1453 = sbr.rel (0) target = $region53
    $region52: #{net_forward.1} parent=1 // pred_region
      _
    $region53: #{net_forward.1} parent=1 // pred_fallthru
      _
    %1454 = vsyncpa [#allocation3], 1
    %1455 = vsyncpa [#allocation5], 1

</llo_original>
